<compile_context>
chip_gen: v6e
topology: v6e:2x2x1
jax: 0.10.0
libtpu: 0.0.40
codegen_flags: <defaults>
</compile_context>

<pallas_src>
import functools

import jax
import jax.numpy as jnp
from jax.experimental import pallas as pl
from jax.experimental.pallas import tpu as pltpu


# ---------------------------------------------------------------------------
# Packing helpers (uint8 <-> uint32).
# ---------------------------------------------------------------------------

def _pack_u32(a):
    """(..., n) uint8 -> (..., n // 4) uint32 (4 consecutive bytes per lane)."""
    return jax.lax.bitcast_convert_type(
        a.reshape(a.shape[:-1] + (a.shape[-1] // 4, 4)), jnp.uint32)


def _unpack_u8(a32):
    """(..., m) uint32 -> (..., 4 * m) uint8 (inverse of _pack_u32)."""
    u8 = jax.lax.bitcast_convert_type(a32, jnp.uint8)
    return u8.reshape(a32.shape[:-1] + (a32.shape[-1] * 4,))


_BYTE_SHIFTS = None


def _byte_shifts():
    """Bit offset of byte index t (0..3) inside a uint32 produced by _pack_u32.

    Probed once on-device so the uint32-domain permutation never depends on an
    assumed bitcast endianness.  Cached; safe to call under jit (runs eagerly
    on constants).
    """
    global _BYTE_SHIFTS
    if _BYTE_SHIFTS is None:
        probe = int(jax.lax.bitcast_convert_type(
            jnp.array([[1, 2, 3, 4]], dtype=jnp.uint8), jnp.uint32)[0])
        if probe == 0x04030201:
            _BYTE_SHIFTS = (0, 8, 16, 24)     # little-endian packing
        elif probe == 0x01020304:
            _BYTE_SHIFTS = (24, 16, 8, 0)     # big-endian packing
        else:
            raise RuntimeError(f"unexpected bitcast byte order: {probe:#x}")
    return _BYTE_SHIFTS


# ---------------------------------------------------------------------------
# Kernel.
# ---------------------------------------------------------------------------

def _regular_binary_kernel(x_ref, w_ref, z_ref, *, s32):
    """One batch tile: XNOR with both weights + AND-reduce the two halves.

    x_ref: (tb, 2*s32) uint32  -- 4 packed input bytes per lane
    w_ref: (4,  s32)   uint32  -- [w1_left, w1_right, w2_left, w2_right], ^255 folded in
    z_ref: (tb, 2*s32) uint32  -- fused output in z-order: [z_left | z_right]
    """
    xl = x_ref[:, :s32]
    xr = x_ref[:, s32:]
    w1l = w_ref[0:1, :]
    w1r = w_ref[1:2, :]
    w2l = w_ref[2:3, :]
    w2r = w_ref[3:4, :]
    z_ref[:, :s32] = jnp.bitwise_and(jnp.bitwise_xor(xl, w1l),
                                     jnp.bitwise_xor(xr, w1r))   # z_left
    z_ref[:, s32:] = jnp.bitwise_and(jnp.bitwise_xor(xr, w2r),
                                     jnp.bitwise_xor(xl, w2l))   # z_right


# ---------------------------------------------------------------------------
# Tiling heuristic.
# ---------------------------------------------------------------------------

def _pick_block_rows(batch, width, *, target_bytes=4 * 1024 * 1024, min_steps=4):
    """Batch-tile rows: bytes-capped (~4 MiB of x), >= min_steps grid steps."""
    if batch <= 8:
        return batch                                        # full-extent block
    cap = max(8, (target_bytes // max(width, 1)) // 8 * 8)  # bytes-based cap
    # Aim for at least `min_steps` tiles (pipeline overlap + v7x megacore).
    want = max(8, ((batch + min_steps - 1) // min_steps + 7) // 8 * 8)
    return min(cap, want)


# ---------------------------------------------------------------------------
# Wrapper.
# ---------------------------------------------------------------------------

def _transpose2_u32(z32, batch, width, sh):
    """transpose2 (even/odd byte de-interleave) done in the uint32 domain."""
    w32 = width // 4
    m = jnp.uint32(0xFF)
    b0 = (z32 >> jnp.uint32(sh[0])) & m       # z[4k+0]
    b1 = (z32 >> jnp.uint32(sh[1])) & m       # z[4k+1]
    b2 = (z32 >> jnp.uint32(sh[2])) & m       # z[4k+2]
    b3 = (z32 >> jnp.uint32(sh[3])) & m       # z[4k+3]
    # Pair adjacent uint32 lanes: z lanes (2k, 2k+1) feed output lane k.
    p0 = b0.reshape(batch, w32 // 2, 2)
    p1 = b1.reshape(batch, w32 // 2, 2)
    p2 = b2.reshape(batch, w32 // 2, 2)
    p3 = b3.reshape(batch, w32 // 2, 2)
    out_even = ((p0[:, :, 0] << jnp.uint32(sh[0])) |
                (p2[:, :, 0] << jnp.uint32(sh[1])) |
                (p0[:, :, 1] << jnp.uint32(sh[2])) |
                (p2[:, :, 1] << jnp.uint32(sh[3])))
    out_odd = ((p1[:, :, 0] << jnp.uint32(sh[0])) |
               (p3[:, :, 0] << jnp.uint32(sh[1])) |
               (p1[:, :, 1] << jnp.uint32(sh[2])) |
               (p3[:, :, 1] << jnp.uint32(sh[3])))
    out32 = jnp.concatenate([out_even, out_odd], axis=1)     # (batch, w32)
    return _unpack_u8(out32)                                  # (batch, width)


def regular_binary_forward(x, w1, w2, *, block_rows=None):
    """x: (batch, width) uint8; w1, w2: (width,) uint8 -> (batch, width) uint8."""
    assert x.dtype == jnp.uint8 and w1.dtype == jnp.uint8 and w2.dtype == jnp.uint8
    batch, width = x.shape
    assert w1.shape == (width,) and w2.shape == (width,)
    assert width % 8 == 0, "width must be a multiple of 8 (u32 packing + split)"
    # width % 1024 == 0 keeps in-kernel lane slices/stores on 128-lane vreg
    # boundaries (unmasked vst); other widths remain correct.
    split = width // 2
    w32 = width // 4
    s32 = split // 4

    sh = _byte_shifts()

    # Fold the `^ 255` into the weights once; stack all four halves into one
    # VMEM-resident (4, s32) block.
    inv = jnp.uint8(255)
    w1i = jnp.bitwise_xor(w1, inv)
    w2i = jnp.bitwise_xor(w2, inv)
    w_packed = _pack_u32(jnp.stack(
        [w1i[:split], w1i[split:], w2i[:split], w2i[split:]], axis=0))   # (4, s32)

    x32 = _pack_u32(x)                                                   # (batch, w32)

    if block_rows is not None:
        tb = max(1, min(int(block_rows), batch))
        if tb < batch:
            tb = max(8, tb // 8 * 8)
    else:
        tb = _pick_block_rows(batch, width)
    grid = (pl.cdiv(batch, tb),)

    kernel = functools.partial(_regular_binary_kernel, s32=s32)

    z32 = pl.pallas_call(
        kernel,
        out_shape=jax.ShapeDtypeStruct((batch, w32), jnp.uint32),
        grid=grid,
        in_specs=[
            pl.BlockSpec((tb, w32), lambda i: (i, 0)),    # x tile (full width)
            pl.BlockSpec((4, s32), lambda i: (0, 0)),     # weights, VMEM-resident
        ],
        out_specs=pl.BlockSpec((tb, w32), lambda i: (i, 0)),
        compiler_params=pltpu.CompilerParams(
            dimension_semantics=("parallel",),
            vmem_limit_bytes=48 * 1024 * 1024),
        cost_estimate=pl.CostEstimate(
            flops=6 * batch * s32,
            transcendentals=0,
            bytes_accessed=2 * batch * width + 4 * split),
    )(x32, w_packed)

    # TODO(synk): the final transpose2 byte de-interleave stays in XLA (uint32
    # mask/shift + minor-dim-2 pairing); fusing it in-kernel needs a stride-2
    # lane compaction that has no cheap, reliably-lowering Mosaic primitive.
    return _transpose2_u32(z32, batch, width, sh)


# ---------------------------------------------------------------------------
# Reference / demo.
# ---------------------------------------------------------------------------

def gen_rand_bits(key, shape, prob1=0.5):
    """JAX equivalent of PyTorch gen_rand_bits: uint8 values of 0 or 255."""
    u = jax.random.uniform(key, shape)
    return jnp.where(u + prob1 >= 1.0, jnp.uint8(255), jnp.uint8(0))


def reference_forward(x, w1, w2):
    """Pure-JAX reference matching the PyTorch Regular_Binary.forward exactly."""
    batch, width = x.shape
    split = width // 2
    inv = jnp.uint8(255)
    z1 = jnp.bitwise_xor(jnp.bitwise_xor(x, w1[None, :]), inv)
    z2 = jnp.bitwise_xor(jnp.bitwise_xor(x, w2[None, :]), inv)
    z_left = jnp.bitwise_and(z1[:, :split], z1[:, split:])
    z_right = jnp.bitwise_and(z2[:, split:], z2[:, :split])
    z = jnp.concatenate([z_left, z_right], axis=1)
    z = z.reshape(batch, split, 2)
    z = jnp.swapaxes(z, 1, 2)
    return z.reshape(batch, width)


if __name__ == "__main__":
    key = jax.random.PRNGKey(0)
    kx, k1, k2 = jax.random.split(key, 3)

    batch, width = 128, 1024   # auto-tiling -> tb=32, 4 pipelined grid steps

    w1 = gen_rand_bits(k1, (width,))
    w2 = gen_rand_bits(k2, (width,))
    x = jax.random.randint(kx, (batch, width), 0, 256, dtype=jnp.int32).astype(jnp.uint8)

    _byte_shifts()   # probe the device bitcast byte order once (cached)

    fwd = jax.jit(regular_binary_forward)
    out = jax.block_until_ready(fwd(x, w1, w2))

    ref = reference_forward(x, w1, w2)
    assert out.shape == (batch, width) and out.dtype == jnp.uint8
    assert bool(jnp.all(out == ref))

    print("KERNEL_OK")
</pallas_src>

<mosaic_0001>
module attributes {stable_mosaic.version = 11 : i64} {
  func.func @_regular_binary_kernel(%arg0: i32, %arg1: memref<32x256xi32, #tpu.memory_space<vmem>>, %arg2: memref<4x128xi32, #tpu.memory_space<vmem>>, %arg3: memref<32x256xi32, #tpu.memory_space<vmem>>) attributes {dimension_semantics = [#tpu.dimension_semantics<parallel>], iteration_bounds = array<i64: 4>, scalar_prefetch = 0 : i64, scratch_operands = 0 : i64, tpu.core_type = #tpu.core_type<tc>, window_params = [{transform_indices = @transform_0, window_bounds = array<i64: 32, 256>}, {pipeline_mode = #tpu.pipeline_mode<synchronous>, transform_indices = @transform_1, window_bounds = array<i64: 4, 128>}, {transform_indices = @transform_2, window_bounds = array<i64: 32, 256>}]} {
    %c0 = arith.constant 0 : index
    %c0_0 = arith.constant 0 : index
    %0 = vector.load %arg1[%c0, %c0_0] : memref<32x256xi32, #tpu.memory_space<vmem>>, vector<32x128xi32>
    %c0_1 = arith.constant 0 : index
    %c128 = arith.constant 128 : index
    %1 = vector.load %arg1[%c0_1, %c128] : memref<32x256xi32, #tpu.memory_space<vmem>>, vector<32x128xi32>
    %c0_2 = arith.constant 0 : index
    %c0_3 = arith.constant 0 : index
    %2 = vector.load %arg2[%c0_2, %c0_3] : memref<4x128xi32, #tpu.memory_space<vmem>>, vector<1x128xi32>
    %c1 = arith.constant 1 : index
    %c0_4 = arith.constant 0 : index
    %3 = vector.load %arg2[%c1, %c0_4] : memref<4x128xi32, #tpu.memory_space<vmem>>, vector<1x128xi32>
    %c2 = arith.constant 2 : index
    %c0_5 = arith.constant 0 : index
    %4 = vector.load %arg2[%c2, %c0_5] : memref<4x128xi32, #tpu.memory_space<vmem>>, vector<1x128xi32>
    %c3 = arith.constant 3 : index
    %c0_6 = arith.constant 0 : index
    %5 = vector.load %arg2[%c3, %c0_6] : memref<4x128xi32, #tpu.memory_space<vmem>>, vector<1x128xi32>
    %6 = vector.broadcast %2 : vector<1x128xi32> to vector<32x128xi32>
    %7 = arith.xori %0, %6 : vector<32x128xi32>
    %8 = vector.broadcast %3 : vector<1x128xi32> to vector<32x128xi32>
    %9 = arith.xori %1, %8 : vector<32x128xi32>
    %10 = arith.andi %7, %9 : vector<32x128xi32>
    %c0_7 = arith.constant 0 : index
    %c0_8 = arith.constant 0 : index
    %11 = vector.load %arg3[%c0_7, %c0_8] : memref<32x256xi32, #tpu.memory_space<vmem>>, vector<32x128xi32>
    tpu.vector_store %arg3[%c0_7, %c0_8], %10 {strides = array<i32>} : memref<32x256xi32, #tpu.memory_space<vmem>>, vector<32x128xi32>,
    %12 = vector.broadcast %5 : vector<1x128xi32> to vector<32x128xi32>
    %13 = arith.xori %1, %12 : vector<32x128xi32>
    %14 = vector.broadcast %4 : vector<1x128xi32> to vector<32x128xi32>
    %15 = arith.xori %0, %14 : vector<32x128xi32>
    %16 = arith.andi %13, %15 : vector<32x128xi32>
    %c0_9 = arith.constant 0 : index
    %c128_10 = arith.constant 128 : index
    %17 = vector.load %arg3[%c0_9, %c128_10] : memref<32x256xi32, #tpu.memory_space<vmem>>, vector<32x128xi32>
    tpu.vector_store %arg3[%c0_9, %c128_10], %16 {strides = array<i32>} : memref<32x256xi32, #tpu.memory_space<vmem>>, vector<32x128xi32>,
    return
  }
  func.func @transform_0(%arg0: i32) -> (i32, i32) {
    %c0_i32 = arith.constant 0 : i32
    %c0_i32_0 = arith.constant 0 : i32
    return %arg0, %c0_i32 : i32, i32
  }
  func.func @transform_1(%arg0: i32) -> (i32, i32) {
    %c0_i32 = arith.constant 0 : i32
    %c0_i32_0 = arith.constant 0 : i32
    %c0_i32_1 = arith.constant 0 : i32
    return %c0_i32, %c0_i32_0 : i32, i32
  }
  func.func @transform_2(%arg0: i32) -> (i32, i32) {
    %c0_i32 = arith.constant 0 : i32
    %c0_i32_0 = arith.constant 0 : i32
    return %arg0, %c0_i32 : i32, i32
  }
}

</mosaic_0001>

<llo_original>
// kernel: regular_binary_forward.1
$region0: #{regular_binary_forward.1}
  #allocation0 [shape = 'u32[]', space=smem, size = 0x4, offset = 0x4, fixed_abs, tag = 'smem constant byte address 0x4 - core index']
  #allocation1 [shape = 'u32[144,128]{1,0:T(1,128)}', space=vmem, size = 0x12000, scoped, tag = 'internal scratch']
  %s0 = inlined_call_operand.vmem [shape: u32[128,256], index: 0, kind: input, shape index: {}]
  %s1 = inlined_call_operand.vmem [shape: u32[4,128], index: 1, kind: input, shape index: {}]
  %s2 = inlined_call_operand.vmem [shape: u32[128,256], index: 2, kind: output, shape index: {}]
  %s3 = sld [smem:[#allocation0]]
  $region41: #{regular_binary_forward.1} parent=0
    _
  %s5 = ssub.s32 1, %s3
  %s6 = scalar_select 0, %s5, %s3
  loop: start=0, step=1, limit=6
  $region2: #{regular_binary_forward.1} parent=0 // loop_pre_header
    _
  $region3: #{regular_binary_forward.1} parent=0 // loop_header
    %s8 = sphi 0, %s12
    %p9 = scmp.ge.s32.totalorder %s8, 6
    %s18 = sphi 0, %s20
    %s21 = sphi 0, %s18
    %s22 = sphi 0, %s21
    %s38 = sphi 0, %s22
    %s42 = sphi 0, %s42
    %s44 = sphi 0, %s42
    %s45 = sphi 0, %s44
    %s59 = sphi 0, %s45
    %s65 = sphi 0, %s67
    %s68 = sphi 0, %s65
    %s69 = sphi 0, %s68
    %s85 = sphi 0, %s69
  $region4: #{regular_binary_forward.1} parent=0 // loop_header_branch
    %11 = sbr.rel (%p9) target = $region8
  $region5: #{regular_binary_forward.1} parent=0 // loop_body
    %s13 = ssub.s32 %s8, 1
    %s14 = ssub.s32 %s8, 2
    %s15 = sadd.s32 %s8, 1
    %s16 = ssub.s32 %s8, %s15
    %p17 = scmp.eq.s32.totalorder %s16, 0
    %s19 = sadd.s32 %s18, 1
    %s20 = scalar_select %p17, %s18, %s19
    %p23 = pneg %p17
    %p24 = scmp.eq.s32.totalorder %s8, 3
    %p25 = por %p23, %p24
    %p26 = scmp.ne.s32.totalorder %s18, %s21
    %p27 = scmp.eq.s32.totalorder %s8, 0
    %p28 = por %p26, %p27
    %p29 = scmp.ne.s32.totalorder %s18, %s21
    %p30 = scmp.eq.s32.totalorder %s13, 3
    %p31 = por %p29, %p30
    %p32 = scmp.ne.s32.totalorder %s21, %s22
    %p33 = scmp.eq.s32.totalorder %s13, 0
    %p34 = por %p32, %p33
    %p35 = scmp.ne.s32.totalorder %s21, %s22
    %p36 = scmp.eq.s32.totalorder %s14, 3
    %p37 = por %p35, %p36
    %p39 = scmp.ne.s32.totalorder %s22, %s38
    %p40 = scmp.eq.s32.totalorder %s14, 0
    %p41 = por %p39, %p40
    %s43 = sadd.s32 %s42, 1
    %p46 = scmp.eq.s32.totalorder %s8, 3
    %p47 = scmp.ne.s32.totalorder %s42, %s44
    %p48 = scmp.eq.s32.totalorder %s8, 0
    %p49 = por %p47, %p48
    %p50 = scmp.ne.s32.totalorder %s42, %s44
    %p51 = scmp.eq.s32.totalorder %s13, 3
    %p52 = por %p50, %p51
    %p53 = scmp.ne.s32.totalorder %s44, %s45
    %p54 = scmp.eq.s32.totalorder %s13, 0
    %p55 = por %p53, %p54
    %p56 = scmp.ne.s32.totalorder %s44, %s45
    %p57 = scmp.eq.s32.totalorder %s14, 3
    %p58 = por %p56, %p57
    %p60 = scmp.ne.s32.totalorder %s45, %s59
    %p61 = scmp.eq.s32.totalorder %s14, 0
    %p62 = por %p60, %p61
    %s63 = ssub.s32 %s8, %s15
    %p64 = scmp.eq.s32.totalorder %s63, 0
    %s66 = sadd.s32 %s65, 1
    %s67 = scalar_select %p64, %s65, %s66
    %p70 = pneg %p64
    %p71 = scmp.eq.s32.totalorder %s8, 3
    %p72 = por %p70, %p71
    %p73 = scmp.ne.s32.totalorder %s65, %s68
    %p74 = scmp.eq.s32.totalorder %s8, 0
    %p75 = por %p73, %p74
    %p76 = scmp.ne.s32.totalorder %s65, %s68
    %p77 = scmp.eq.s32.totalorder %s13, 3
    %p78 = por %p76, %p77
    %p79 = scmp.ne.s32.totalorder %s68, %s69
    %p80 = scmp.eq.s32.totalorder %s13, 0
    %p81 = por %p79, %p80
    %p82 = scmp.ne.s32.totalorder %s68, %s69
    %p83 = scmp.eq.s32.totalorder %s14, 3
    %p84 = por %p82, %p83
    %p86 = scmp.ne.s32.totalorder %s69, %s85
    %p87 = scmp.eq.s32.totalorder %s14, 0
    %p88 = por %p86, %p87
    %p89 = scmp.le.s32.totalorder 1, %s8
    %p90 = scmp.lt.s32.totalorder %s8, 5
    %p91 = pnand %p89, %p90
    %p92 = pneg %p91
    // Predicated region
    $region9: #{regular_binary_forward.1} parent=5 // pred_check
      _
    $region10: #{regular_binary_forward.1} parent=5 // pred_check_branch
      %94 = sbr.rel (%p91) target = $region12
    $region11: #{regular_binary_forward.1} parent=5 // pred_region
      %s95 = ssub.s32 %s8, 1
      // Predicated region
      $region13: #{regular_binary_forward.1} parent=11 // pred_check
        %p96 = pneg %p55
      $region14: #{regular_binary_forward.1} parent=11 // pred_check_branch
        %98 = sbr.rel (%p96) target = $region16
      $region15: #{regular_binary_forward.1} parent=11 // pred_region
        _
      $region16: #{regular_binary_forward.1} parent=11 // pred_fallthru
        _
    $region12: #{regular_binary_forward.1} parent=5 // pred_fallthru
      _
    %p99 = scmp.lt.s32.totalorder %s8, 4
    // Predicated region
    $region17: #{regular_binary_forward.1} parent=5 // pred_check
      %p100 = pneg %p99
    $region18: #{regular_binary_forward.1} parent=5 // pred_check_branch
      %102 = sbr.rel (%p100) target = $region20
    $region19: #{regular_binary_forward.1} parent=5 // pred_region
      // Predicated region
      $region21: #{regular_binary_forward.1} parent=19 // pred_check
        %p103 = pneg %p28
      $region22: #{regular_binary_forward.1} parent=19 // pred_check_branch
        %105 = sbr.rel (%p103) target = $region24
      $region23: #{regular_binary_forward.1} parent=19 // pred_region
        %s106 = smul.u32 4, %s8
        %p107 = scmp.lt.s32.totalorder %s106, 15
        %s108 = scalar_select %p107, %s106, 15
        %s109 = smul.addr %s108, 2
        %s110 = smul.addr %s109, 8
        %s111 = scalar_lea.vmem %s0, %s110
        %s112 = smul.u32 4, %s8
      $region24: #{regular_binary_forward.1} parent=19 // pred_fallthru
        _
    $region20: #{regular_binary_forward.1} parent=5 // pred_fallthru
      _
    %p113 = scmp.le.s32.totalorder 1, %s8
    %p114 = scmp.lt.s32.totalorder %s8, 5
    %p115 = pnand %p113, %p114
    %p116 = pneg %p115
    // Predicated region
    $region25: #{regular_binary_forward.1} parent=5 // pred_check
      _
    $region26: #{regular_binary_forward.1} parent=5 // pred_check_branch
      %118 = sbr.rel (%p115) target = $region28
    $region27: #{regular_binary_forward.1} parent=5 // pred_region
      %s119 = ssub.s32 %s8, 1
      %s120 = smul.u32 4, %s13
      %p121 = scmp.lt.s32.totalorder %s120, 15
      %s122 = scalar_select %p121, %s120, 15
      %s123 = smul.addr %s122, 2
      %s124 = smul.addr %s123, 8
      %s125 = scalar_lea.vmem %s0, %s124
      %p126 = pneg %p34
      %p127 = pneg %p31
      %p128 = pneg %p55
      %p129 = pneg %p52
      %p130 = pneg %p81
      %p131 = pneg %p78
      %s132 = smul.u32 4, %s13
      %p133 = scmp.lt.s32.totalorder %s132, 15
      %s134 = scalar_select %p133, %s132, 15
      %s135 = smul.addr %s134, 2
      %s136 = smul.addr %s135, 8
      %s137 = scalar_lea.vmem %s2, %s136
      %s138 = smul.u32 4, %s13
      %p139 = scmp.lt.s32.totalorder %s138, 15
      %s140 = scalar_select %p139, %s138, 15
      %s141 = smul.addr %s140, 2
      %s142 = smul.addr %s141, 8
      %s143 = scalar_lea.vmem %s0, %s142
      %s144 = smul.u32 4, %s13
      %s145 = smul.u32 4, %s13
      %p146 = scmp.lt.s32.totalorder %s145, 15
      %s147 = scalar_select %p146, %s145, 15
      %s148 = smul.addr %s147, 2
      %s149 = smul.addr %s148, 8
      %s150 = scalar_lea.vmem %s2, %s149
      %s151 = smul.u32 4, %s13
      %v152 = vld [vmem:[%s143] sm:$0xff]
      %v153 = vld [vmem:[%s143 + $0x10] sm:$0xff]
      %v154 = vld [vmem:[%s143 + $0x20] sm:$0xff]
      %v155 = vld [vmem:[%s143 + $0x30] sm:$0xff]
      %v156 = vld [vmem:[%s143 + $0x8] sm:$0xff]
      %v157 = vld [vmem:[%s143 + $0x18] sm:$0xff]
      %v158 = vld [vmem:[%s143 + $0x28] sm:$0xff]
      %v159 = vld [vmem:[%s143 + $0x38] sm:$0xff]
      %v160 = vld [vmem:[%s1] sm:$0x1]
      %v161 = vld [vmem:[%s1 + $0x1] sm:$0x1]
      %v162 = vld [vmem:[%s1 + $0x2] sm:$0x1]
      %v163 = vld [vmem:[%s1 + $0x3] sm:$0x1]
      %v164 = vlaneseq
      %v165 = vshrl.u32 %v164, 7
      %v166 = vsub.s32 0, %v165
      %v167 = vrot.slane %v160, %v166
      %v168 = vxor.u32 %v152, %v167
      %v169 = vxor.u32 %v153, %v167
      %v170 = vxor.u32 %v154, %v167
      %v171 = vxor.u32 %v155, %v167
      %v172 = vlaneseq
      %v173 = vshrl.u32 %v172, 7
      %v174 = vsub.s32 0, %v173
      %v175 = vrot.slane %v161, %v174
      %v176 = vxor.u32 %v156, %v175
      %v177 = vxor.u32 %v157, %v175
      %v178 = vxor.u32 %v158, %v175
      %v179 = vxor.u32 %v159, %v175
      %v180 = vand.u32 %v168, %v176
      %v181 = vand.u32 %v169, %v177
      %v182 = vand.u32 %v170, %v178
      %v183 = vand.u32 %v171, %v179
      %184 = vst [vmem:[%s150] sm:$0xff] %v180
      %185 = vst [vmem:[%s150 + $0x10] sm:$0xff] %v181
      %186 = vst [vmem:[%s150 + $0x20] sm:$0xff] %v182
      %187 = vst [vmem:[%s150 + $0x30] sm:$0xff] %v183
      %v188 = vlaneseq
      %v189 = vshrl.u32 %v188, 7
      %v190 = vsub.s32 0, %v189
      %v191 = vrot.slane %v163, %v190
      %v192 = vxor.u32 %v156, %v191
      %v193 = vxor.u32 %v157, %v191
      %v194 = vxor.u32 %v158, %v191
      %v195 = vxor.u32 %v159, %v191
      %v196 = vlaneseq
      %v197 = vshrl.u32 %v196, 7
      %v198 = vsub.s32 0, %v197
      %v199 = vrot.slane %v162, %v198
      %v200 = vxor.u32 %v152, %v199
      %v201 = vxor.u32 %v153, %v199
      %v202 = vxor.u32 %v154, %v199
      %v203 = vxor.u32 %v155, %v199
      %v204 = vand.u32 %v192, %v200
      %v205 = vand.u32 %v193, %v201
      %v206 = vand.u32 %v194, %v202
      %v207 = vand.u32 %v195, %v203
      %208 = vst [vmem:[%s150 + $0x8] sm:$0xff] %v204
      %209 = vst [vmem:[%s150 + $0x18] sm:$0xff] %v205
      %210 = vst [vmem:[%s150 + $0x28] sm:$0xff] %v206
      %211 = vst [vmem:[%s150 + $0x38] sm:$0xff] %v207
      %s212 = smul.u32 4, %s13
      %p213 = scmp.lt.s32.totalorder %s212, 15
      %s214 = scalar_select %p213, %s212, 15
      %s215 = smul.addr %s214, 2
      %s216 = smul.addr %s215, 8
      %s217 = scalar_lea.vmem %s2, %s216
      // Predicated region
      $region29: #{regular_binary_forward.1} parent=27 // pred_check
        %p218 = pneg %p78
      $region30: #{regular_binary_forward.1} parent=27 // pred_check_branch
        %220 = sbr.rel (%p218) target = $region32
      $region31: #{regular_binary_forward.1} parent=27 // pred_region
        %s221 = smul.u32 4, %s13
      $region32: #{regular_binary_forward.1} parent=27 // pred_fallthru
        _
    $region28: #{regular_binary_forward.1} parent=5 // pred_fallthru
      _
    %p222 = scmp.le.s32.totalorder 2, %s8
    // Predicated region
    $region33: #{regular_binary_forward.1} parent=5 // pred_check
      %p223 = pneg %p222
    $region34: #{regular_binary_forward.1} parent=5 // pred_check_branch
      %225 = sbr.rel (%p223) target = $region36
    $region35: #{regular_binary_forward.1} parent=5 // pred_region
      %s226 = ssub.s32 %s8, 2
      // Predicated region
      $region37: #{regular_binary_forward.1} parent=35 // pred_check
        %p227 = pneg %p84
      $region38: #{regular_binary_forward.1} parent=35 // pred_check_branch
        %229 = sbr.rel (%p227) target = $region40
      $region39: #{regular_binary_forward.1} parent=35 // pred_region
        %s230 = smul.u32 4, %s14
        %p231 = scmp.lt.s32.totalorder %s230, 15
        %s232 = scalar_select %p231, %s230, 15
        %s233 = smul.addr %s232, 2
        %s234 = smul.addr %s233, 8
        %s235 = scalar_lea.vmem %s2, %s234
      $region40: #{regular_binary_forward.1} parent=35 // pred_fallthru
        _
    $region36: #{regular_binary_forward.1} parent=5 // pred_fallthru
      _
  $region6: #{regular_binary_forward.1} parent=0 // loop_footer
    %s12 = sadd.s32 1, %s8
  $region7: #{regular_binary_forward.1} parent=0 // loop_footer_branch
    %7 = sbr.rel target = $region3
  $region8: #{regular_binary_forward.1} parent=0 // loop_exit
    _

</llo_original>
